<compile_context>
chip_gen: v6e
topology: v6e:2x2x1
jax: 0.10.0
libtpu: 0.0.40
codegen_flags: <defaults>
</compile_context>

<pallas_src>
import jax
import jax.numpy as jnp
from jax.experimental import pallas as pl
from jax.experimental.pallas import tpu as pltpu


_NEG_BIG = -1e30   # padded-expert bias: exp(_NEG_BIG - row_max) == 0 in f32


def _make_gating_kernel(n_inputs):
    def kernel(*refs):
        x_refs = refs[:n_inputs]
        w_refs = refs[n_inputs:2 * n_inputs]
        b_ref = refs[2 * n_inputs]
        o_ref = refs[2 * n_inputs + 1]

        # Folded concat: sum of per-chunk partial matmuls, f32 accumulation on MXU.
        logits = jnp.dot(x_refs[0][...], w_refs[0][...],
                         preferred_element_type=jnp.float32)
        for x_r, w_r in zip(x_refs[1:], w_refs[1:]):
            logits = logits + jnp.dot(x_r[...], w_r[...],
                                      preferred_element_type=jnp.float32)
        logits = logits + b_ref[...]                      # (TB, E_pad), f32

        # Numerically stable softmax along the (padded) expert axis.
        # Exact f32 divide (the approx EUP reciprocal was not accurate enough
        # to match the reference).
        m = jnp.max(logits, axis=1, keepdims=True)
        e = jnp.exp(logits - m)
        denom = jnp.sum(e, axis=1, keepdims=True)
        o_ref[...] = (e / denom).astype(o_ref.dtype)

    return kernel


def gating_network(inputs, weight, bias, *, batch_tile=512):
    """inputs: list of (B, d_i); weight: (sum d_i, E); bias: (E,). Returns (B, E)."""
    n = len(inputs)
    B = int(inputs[0].shape[0])
    sizes = [int(x.shape[1]) for x in inputs]
    D = sum(sizes)
    E = int(weight.shape[1])
    assert int(weight.shape[0]) == D
    out_dtype = inputs[0].dtype

    # Pad the expert axis up to a multiple of 128 lanes (lane-dense stores,
    # full MXU N width).  Padded logits get a huge negative bias -> weight 0.
    E_pad = int(pl.cdiv(E, 128) * 128)

    # Split the weight rows to match the input chunks (concat folded into the
    # kernel); zero-pad the expert columns.
    w_chunks = []
    off = 0
    for d in sizes:
        w_c = weight[off:off + d, :]
        if E_pad != E:
            w_c = jnp.pad(w_c, ((0, 0), (0, E_pad - E)))
        w_chunks.append(w_c)
        off += d

    b_pad = jnp.full((1, E_pad), _NEG_BIG, dtype=jnp.float32)
    b_pad = b_pad.at[0, :E].set(bias.astype(jnp.float32))

    # Batch tiling: large tiles for HBM-roofline efficiency, whole batch if small.
    TB = B if B <= batch_tile else batch_tile
    grid = (pl.cdiv(B, TB),)

    in_specs = (
        [pl.BlockSpec((TB, d), lambda i: (i, 0)) for d in sizes]        # x chunks (tiled)
        + [pl.BlockSpec((d, E_pad), lambda i: (0, 0)) for d in sizes]   # weight chunks (resident)
        + [pl.BlockSpec((1, E_pad), lambda i: (0, 0))]                  # bias (resident)
    )
    out_spec = pl.BlockSpec((TB, E_pad), lambda i: (i, 0))

    # Explicit scoped-VMEM budget: double-buffered x/out tiles + resident weights.
    x_bytes = sum(TB * d * jnp.dtype(x.dtype).itemsize for x, d in zip(inputs, sizes))
    w_bytes = sum(d * E_pad * jnp.dtype(weight.dtype).itemsize for d in sizes) + E_pad * 4
    o_bytes = TB * E_pad * jnp.dtype(out_dtype).itemsize
    vmem_limit = int(min(max(2 * (x_bytes + o_bytes) + 2 * w_bytes + (8 << 20),
                             32 << 20),
                         64 << 20))

    out_pad = pl.pallas_call(
        _make_gating_kernel(n),
        out_shape=jax.ShapeDtypeStruct((B, E_pad), out_dtype),
        grid_spec=pltpu.PrefetchScalarGridSpec(
            num_scalar_prefetch=0,
            grid=grid,
            in_specs=in_specs,
            out_specs=out_spec,
        ),
        compiler_params=pltpu.CompilerParams(
            dimension_semantics=("parallel",),
            vmem_limit_bytes=vmem_limit),
    )(*inputs, *w_chunks, b_pad)

    return out_pad[:, :E] if E_pad != E else out_pad


def _reference(inputs, weight, bias):
    x = jnp.concatenate(inputs, axis=1)
    logits = x @ weight + bias[None, :]
    return jax.nn.softmax(logits, axis=1)


def _check(inputs, weight, bias, expert_count):
    out = jax.block_until_ready(gating_network(inputs, weight, bias))
    ref = _reference(inputs, weight, bias)
    B = inputs[0].shape[0]
    assert out.shape == (B, expert_count), out.shape
    # Tolerance accounts for MXU default-precision f32 matmuls and a different
    # (chunked) accumulation order vs the single fused reference matmul.
    assert jnp.allclose(out, ref, atol=1e-3, rtol=1e-3), "mismatch vs reference"
    assert jnp.allclose(jnp.sum(out, axis=1), 1.0, atol=1e-5), "rows must sum to 1"


if __name__ == "__main__":
    key = jax.random.PRNGKey(0)
    input_sizes = (16, 32, 16)          # total_input_size = 64
    expert_count = 8

    k_in, k_w, k_b = jax.random.split(key, 3)
    total_input_size = sum(input_sizes)
    # Deterministic synthetic parameters (mirrors nn.Linear: W (E, D) stored as (D, E)).
    bound = 1.0 / (total_input_size ** 0.5)
    weight = jax.random.uniform(
        k_w, (total_input_size, expert_count), dtype=jnp.float32,
        minval=-bound, maxval=bound)
    bias = jax.random.uniform(
        k_b, (expert_count,), dtype=jnp.float32, minval=-bound, maxval=bound)

    # Small-shape case consistent with the module (single grid step).
    batch = 8
    keys_in = jax.random.split(k_in, len(input_sizes))
    inputs = [jax.random.normal(keys_in[i], (batch, d), dtype=jnp.float32)
              for i, d in enumerate(input_sizes)]
    _check(inputs, weight, bias, expert_count)

    # Larger batch exercising the tiled / pipelined path (grid > 1).
    batch_big = 1024
    keys_big = jax.random.split(jax.random.fold_in(k_in, 1), len(input_sizes))
    inputs_big = [jax.random.normal(keys_big[i], (batch_big, d), dtype=jnp.float32)
                  for i, d in enumerate(input_sizes)]
    _check(inputs_big, weight, bias, expert_count)

    print("KERNEL_OK")
</pallas_src>

<mosaic_0001>
module attributes {stable_mosaic.version = 11 : i64} {
  func.func @kernel(%arg0: i32, %arg1: memref<8x16xf32, #tpu.memory_space<vmem>>, %arg2: memref<8x32xf32, #tpu.memory_space<vmem>>, %arg3: memref<8x16xf32, #tpu.memory_space<vmem>>, %arg4: memref<16x128xf32, #tpu.memory_space<vmem>>, %arg5: memref<32x128xf32, #tpu.memory_space<vmem>>, %arg6: memref<16x128xf32, #tpu.memory_space<vmem>>, %arg7: memref<1x128xf32, #tpu.memory_space<vmem>>, %arg8: memref<8x128xf32, #tpu.memory_space<vmem>>) attributes {dimension_semantics = [#tpu.dimension_semantics<parallel>], iteration_bounds = array<i64: 1>, scalar_prefetch = 0 : i64, scratch_operands = 0 : i64, tpu.core_type = #tpu.core_type<tc>, window_params = [{transform_indices = @transform_0, window_bounds = array<i64: 8, 16>}, {transform_indices = @transform_1, window_bounds = array<i64: 8, 32>}, {transform_indices = @transform_2, window_bounds = array<i64: 8, 16>}, {pipeline_mode = #tpu.pipeline_mode<synchronous>, transform_indices = @transform_3, window_bounds = array<i64: 16, 128>}, {pipeline_mode = #tpu.pipeline_mode<synchronous>, transform_indices = @transform_4, window_bounds = array<i64: 32, 128>}, {pipeline_mode = #tpu.pipeline_mode<synchronous>, transform_indices = @transform_5, window_bounds = array<i64: 16, 128>}, {pipeline_mode = #tpu.pipeline_mode<synchronous>, transform_indices = @transform_6, window_bounds = array<i64: 1, 128>}, {transform_indices = @transform_7, window_bounds = array<i64: 8, 128>}]} {
    %c0 = arith.constant 0 : index
    %c0_0 = arith.constant 0 : index
    %0 = vector.load %arg1[%c0, %c0_0] : memref<8x16xf32, #tpu.memory_space<vmem>>, vector<8x16xf32>
    %c0_1 = arith.constant 0 : index
    %c0_2 = arith.constant 0 : index
    %1 = vector.load %arg4[%c0_1, %c0_2] : memref<16x128xf32, #tpu.memory_space<vmem>>, vector<16x128xf32>
    %cst = arith.constant dense<0.000000e+00> : vector<8x128xf32>
    %2 = tpu.matmul %0, %1, %cst {dimension_numbers = #tpu.dot_dimension_numbers<[1], [0], [0], [1], [0, 0, 1, 1], [], []>} : vector<8x16xf32>, vector<16x128xf32>, vector<8x128xf32> -> vector<8x128xf32>
    %c0_3 = arith.constant 0 : index
    %c0_4 = arith.constant 0 : index
    %3 = vector.load %arg2[%c0_3, %c0_4] : memref<8x32xf32, #tpu.memory_space<vmem>>, vector<8x32xf32>
    %c0_5 = arith.constant 0 : index
    %c0_6 = arith.constant 0 : index
    %4 = vector.load %arg5[%c0_5, %c0_6] : memref<32x128xf32, #tpu.memory_space<vmem>>, vector<32x128xf32>
    %cst_7 = arith.constant dense<0.000000e+00> : vector<8x128xf32>
    %5 = tpu.matmul %3, %4, %cst_7 {dimension_numbers = #tpu.dot_dimension_numbers<[1], [0], [0], [1], [0, 0, 1, 1], [], []>} : vector<8x32xf32>, vector<32x128xf32>, vector<8x128xf32> -> vector<8x128xf32>
    %6 = arith.addf %2, %5 : vector<8x128xf32>
    %c0_8 = arith.constant 0 : index
    %c0_9 = arith.constant 0 : index
    %7 = vector.load %arg3[%c0_8, %c0_9] : memref<8x16xf32, #tpu.memory_space<vmem>>, vector<8x16xf32>
    %c0_10 = arith.constant 0 : index
    %c0_11 = arith.constant 0 : index
    %8 = vector.load %arg6[%c0_10, %c0_11] : memref<16x128xf32, #tpu.memory_space<vmem>>, vector<16x128xf32>
    %cst_12 = arith.constant dense<0.000000e+00> : vector<8x128xf32>
    %9 = tpu.matmul %7, %8, %cst_12 {dimension_numbers = #tpu.dot_dimension_numbers<[1], [0], [0], [1], [0, 0, 1, 1], [], []>} : vector<8x16xf32>, vector<16x128xf32>, vector<8x128xf32> -> vector<8x128xf32>
    %10 = arith.addf %6, %9 : vector<8x128xf32>
    %c0_13 = arith.constant 0 : index
    %c0_14 = arith.constant 0 : index
    %11 = vector.load %arg7[%c0_13, %c0_14] : memref<1x128xf32, #tpu.memory_space<vmem>>, vector<1x128xf32>
    %12 = vector.broadcast %11 : vector<1x128xf32> to vector<8x128xf32>
    %13 = arith.addf %10, %12 : vector<8x128xf32>
    %cst_15 = arith.constant dense<0xFF800000> : vector<8xf32>
    %14 = vector.multi_reduction <maximumf>, %13, %cst_15 [1] : vector<8x128xf32> to vector<8xf32>
    %15 = vector.shape_cast %14 : vector<8xf32> to vector<8x1xf32>
    %16 = vector.broadcast %15 : vector<8x1xf32> to vector<8x128xf32>
    %17 = arith.subf %13, %16 : vector<8x128xf32>
    %18 = math.exp %17 : vector<8x128xf32>
    %cst_16 = arith.constant dense<0.000000e+00> : vector<8xf32>
    %19 = vector.multi_reduction <add>, %18, %cst_16 [1] : vector<8x128xf32> to vector<8xf32>
    %20 = vector.shape_cast %19 : vector<8xf32> to vector<8x1xf32>
    %21 = vector.broadcast %20 : vector<8x1xf32> to vector<8x128xf32>
    %22 = arith.divf %18, %21 : vector<8x128xf32>
    %c0_17 = arith.constant 0 : index
    %c0_18 = arith.constant 0 : index
    %23 = vector.load %arg8[%c0_17, %c0_18] : memref<8x128xf32, #tpu.memory_space<vmem>>, vector<8x128xf32>
    tpu.vector_store %arg8[%c0_17, %c0_18], %22 {strides = array<i32>} : memref<8x128xf32, #tpu.memory_space<vmem>>, vector<8x128xf32>,
    return
  }
  func.func @transform_0(%arg0: i32) -> (i32, i32) {
    %c0_i32 = arith.constant 0 : i32
    %c0_i32_0 = arith.constant 0 : i32
    return %arg0, %c0_i32 : i32, i32
  }
  func.func @transform_1(%arg0: i32) -> (i32, i32) {
    %c0_i32 = arith.constant 0 : i32
    %c0_i32_0 = arith.constant 0 : i32
    return %arg0, %c0_i32 : i32, i32
  }
  func.func @transform_2(%arg0: i32) -> (i32, i32) {
    %c0_i32 = arith.constant 0 : i32
    %c0_i32_0 = arith.constant 0 : i32
    return %arg0, %c0_i32 : i32, i32
  }
  func.func @transform_3(%arg0: i32) -> (i32, i32) {
    %c0_i32 = arith.constant 0 : i32
    %c0_i32_0 = arith.constant 0 : i32
    %c0_i32_1 = arith.constant 0 : i32
    return %c0_i32, %c0_i32_0 : i32, i32
  }
  func.func @transform_4(%arg0: i32) -> (i32, i32) {
    %c0_i32 = arith.constant 0 : i32
    %c0_i32_0 = arith.constant 0 : i32
    %c0_i32_1 = arith.constant 0 : i32
    return %c0_i32, %c0_i32_0 : i32, i32
  }
  func.func @transform_5(%arg0: i32) -> (i32, i32) {
    %c0_i32 = arith.constant 0 : i32
    %c0_i32_0 = arith.constant 0 : i32
    %c0_i32_1 = arith.constant 0 : i32
    return %c0_i32, %c0_i32_0 : i32, i32
  }
  func.func @transform_6(%arg0: i32) -> (i32, i32) {
    %c0_i32 = arith.constant 0 : i32
    %c0_i32_0 = arith.constant 0 : i32
    %c0_i32_1 = arith.constant 0 : i32
    return %c0_i32, %c0_i32_0 : i32, i32
  }
  func.func @transform_7(%arg0: i32) -> (i32, i32) {
    %c0_i32 = arith.constant 0 : i32
    %c0_i32_0 = arith.constant 0 : i32
    return %arg0, %c0_i32 : i32, i32
  }
}

</mosaic_0001>

<llo_original>
// kernel: tpu_custom_call.1
$region0: #{tpu_custom_call.1}
  #allocation0 [shape = 'u32[]', space=smem, size = 0x4, offset = 0x4, fixed_abs, tag = 'smem constant byte address 0x4 - core index']
  #allocation1 [shape = 'u32[144,128]{1,0:T(1,128)}', space=vmem, size = 0x12000, scoped, tag = 'internal scratch']
  %s0 = inlined_call_operand.hbm [shape: f32[8,16], index: 0, kind: input, shape index: {}]
  %s1 = inlined_call_operand.hbm [shape: f32[8,32], index: 1, kind: input, shape index: {}]
  %s2 = inlined_call_operand.hbm [shape: f32[8,16], index: 2, kind: input, shape index: {}]
  %s3 = inlined_call_operand.hbm [shape: f32[16,128], index: 3, kind: input, shape index: {}]
  %s4 = inlined_call_operand.hbm [shape: f32[32,128], index: 4, kind: input, shape index: {}]
  %s5 = inlined_call_operand.hbm [shape: f32[16,128], index: 5, kind: input, shape index: {}]
  %s6 = inlined_call_operand.vmem [shape: f32[1,128], index: 6, kind: input, shape index: {}]
  %s7 = inlined_call_operand.hbm [shape: f32[8,128], index: 7, kind: output, shape index: {}]
  %s8 = sld [smem:[#allocation0]]
  $region62: #{tpu_custom_call.1} parent=0
    _
  %s10 = ssub.s32 1, %s8
  %s11 = scalar_select 0, %s10, %s8
  $region1: #{tpu_custom_call.1} parent=0
    #allocation2 [shape = 'u8[4096]{0}', space=vmem, size = 0x1000, scoped, tag = 'input window, operand 0, single buffered']
    #allocation3 [shape = 's32[1]{0}', space=sflag, size = 0x4, scoped, tag = 'scoped memory for tpu_custom_call.1']
    #allocation4 [shape = 's32[1]{0}', space=sflag, size = 0x4, scoped, tag = 'scoped memory for tpu_custom_call.1']
    #allocation5 [shape = 'u8[4096]{0}', space=vmem, size = 0x1000, scoped, tag = 'input window, operand 1, single buffered']
    #allocation6 [shape = 's32[1]{0}', space=sflag, size = 0x4, scoped, tag = 'scoped memory for tpu_custom_call.1']
    #allocation7 [shape = 'u8[4096]{0}', space=vmem, size = 0x1000, scoped, tag = 'input window, operand 2, single buffered']
    #allocation8 [shape = 'u8[8192]{0}', space=vmem, size = 0x2000, scoped, tag = 'input window, operand 3, single buffered']
    #allocation9 [shape = 's32[1]{0}', space=sflag, size = 0x4, scoped, tag = 'scoped memory for tpu_custom_call.1']
    #allocation10 [shape = 'u8[16384]{0}', space=vmem, size = 0x4000, scoped, tag = 'input window, operand 4, single buffered']
    #allocation11 [shape = 'u8[8192]{0}', space=vmem, size = 0x2000, scoped, tag = 'input window, operand 5, single buffered']
    #allocation12 [shape = 's32[1]{0}', space=sflag, size = 0x4, scoped, tag = 'scoped memory for tpu_custom_call.1']
    #allocation13 [shape = 'u8[4096]{0}', space=vmem, size = 0x1000, scoped, tag = 'output window, operand 0, single buffered']
    %12 = vsyncpa [#allocation3], 0
    %13 = vsyncpa [#allocation6], 0
    %14 = vsyncpa [#allocation9], 0
    %15 = vsyncpa [#allocation12], 0
    %16 = vsyncpa [#allocation4], 0
    // Predicated region
    $region2: #{tpu_custom_call.1} parent=1 // pred_check
      _
    $region3: #{tpu_custom_call.1} parent=1 // pred_check_branch
      %18 = sbr.rel (0) target = $region5
    $region4: #{tpu_custom_call.1} parent=1 // pred_region
      %s20 = ssub.s32 128, 128
      %21 = vsyncadd [#allocation3], %s20
      %s23 = sshll.u32 [#allocation2], 4
      %s24 = int_to_ptr.vmem [resolvable:$true] %s23
      %26 = dma.hbm_to_vmem [thread:$0]  %s0, 128, %s24, [#allocation3]
    $region5: #{tpu_custom_call.1} parent=1 // pred_fallthru
      _
    // Predicated region
    $region6: #{tpu_custom_call.1} parent=1 // pred_check
      _
    $region7: #{tpu_custom_call.1} parent=1 // pred_check_branch
      %28 = sbr.rel (0) target = $region9
    $region8: #{tpu_custom_call.1} parent=1 // pred_region
      %s30 = ssub.s32 128, 128
      %31 = vsyncadd [#allocation6], %s30
      %s33 = sshll.u32 [#allocation5], 4
      %s34 = int_to_ptr.vmem [resolvable:$true] %s33
      %36 = dma.hbm_to_vmem [thread:$0]  %s1, 128, %s34, [#allocation6]
    $region9: #{tpu_custom_call.1} parent=1 // pred_fallthru
      _
    // Predicated region
    $region10: #{tpu_custom_call.1} parent=1 // pred_check
      _
    $region11: #{tpu_custom_call.1} parent=1 // pred_check_branch
      %38 = sbr.rel (0) target = $region13
    $region12: #{tpu_custom_call.1} parent=1 // pred_region
      %s40 = ssub.s32 128, 128
      %41 = vsyncadd [#allocation6], %s40
      %s43 = sshll.u32 [#allocation7], 4
      %s44 = int_to_ptr.vmem [resolvable:$true] %s43
      %46 = dma.hbm_to_vmem [thread:$0]  %s2, 128, %s44, [#allocation6]
    $region13: #{tpu_custom_call.1} parent=1 // pred_fallthru
      _
    // Predicated region
    $region14: #{tpu_custom_call.1} parent=1 // pred_check
      _
    $region15: #{tpu_custom_call.1} parent=1 // pred_check_branch
      %48 = sbr.rel (0) target = $region17
    $region16: #{tpu_custom_call.1} parent=1 // pred_region
      %s50 = ssub.s32 256, 256
      %51 = vsyncadd [#allocation9], %s50
      %s52 = sshll.u32 [#allocation8], 4
      %s53 = int_to_ptr.vmem [resolvable:$true] %s52
      %58 = dma.hbm_to_vmem [thread:$0]  %s3, 256, %s53, [#allocation9], 128, 128, 8
    $region17: #{tpu_custom_call.1} parent=1 // pred_fallthru
      _
    // Predicated region
    $region18: #{tpu_custom_call.1} parent=1 // pred_check
      _
    $region19: #{tpu_custom_call.1} parent=1 // pred_check_branch
      %60 = sbr.rel (0) target = $region21
    $region20: #{tpu_custom_call.1} parent=1 // pred_region
      %s62 = ssub.s32 512, 512
      %63 = vsyncadd [#allocation9], %s62
      %s64 = sshll.u32 [#allocation10], 4
      %s65 = int_to_ptr.vmem [resolvable:$true] %s64
      %70 = dma.hbm_to_vmem [thread:$0]  %s4, 512, %s65, [#allocation9], 128, 128, 8
    $region21: #{tpu_custom_call.1} parent=1 // pred_fallthru
      _
    // Predicated region
    $region22: #{tpu_custom_call.1} parent=1 // pred_check
      _
    $region23: #{tpu_custom_call.1} parent=1 // pred_check_branch
      %72 = sbr.rel (0) target = $region25
    $region24: #{tpu_custom_call.1} parent=1 // pred_region
      %s74 = ssub.s32 256, 256
      %75 = vsyncadd [#allocation12], %s74
      %s76 = sshll.u32 [#allocation11], 4
      %s77 = int_to_ptr.vmem [resolvable:$true] %s76
      %82 = dma.hbm_to_vmem [thread:$0]  %s5, 256, %s77, [#allocation12], 128, 128, 8
    $region25: #{tpu_custom_call.1} parent=1 // pred_fallthru
      _
    // Predicated region
    $region26: #{tpu_custom_call.1} parent=1 // pred_check
      _
    $region27: #{tpu_custom_call.1} parent=1 // pred_check_branch
      %84 = sbr.rel (0) target = $region29
    $region28: #{tpu_custom_call.1} parent=1 // pred_region
      _
    $region29: #{tpu_custom_call.1} parent=1 // pred_fallthru
      _
    // Predicated region
    $region30: #{tpu_custom_call.1} parent=1 // pred_check
      _
    $region31: #{tpu_custom_call.1} parent=1 // pred_check_branch
      %86 = sbr.rel (0) target = $region33
    $region32: #{tpu_custom_call.1} parent=1 // pred_region
      %87 = dma.done [#allocation3], 128
    $region33: #{tpu_custom_call.1} parent=1 // pred_fallthru
      _
    // Predicated region
    $region34: #{tpu_custom_call.1} parent=1 // pred_check
      _
    $region35: #{tpu_custom_call.1} parent=1 // pred_check_branch
      %89 = sbr.rel (0) target = $region37
    $region36: #{tpu_custom_call.1} parent=1 // pred_region
      %90 = dma.done [#allocation6], 128
    $region37: #{tpu_custom_call.1} parent=1 // pred_fallthru
      _
    // Predicated region
    $region38: #{tpu_custom_call.1} parent=1 // pred_check
      _
    $region39: #{tpu_custom_call.1} parent=1 // pred_check_branch
      %92 = sbr.rel (0) target = $region41
    $region40: #{tpu_custom_call.1} parent=1 // pred_region
      %93 = dma.done [#allocation6], 128
    $region41: #{tpu_custom_call.1} parent=1 // pred_fallthru
      _
    // Predicated region
    $region42: #{tpu_custom_call.1} parent=1 // pred_check
      _
    $region43: #{tpu_custom_call.1} parent=1 // pred_check_branch
      %95 = sbr.rel (0) target = $region45
    $region44: #{tpu_custom_call.1} parent=1 // pred_region
      %96 = dma.done [#allocation9], 256
    $region45: #{tpu_custom_call.1} parent=1 // pred_fallthru
      _
    // Predicated region
    $region46: #{tpu_custom_call.1} parent=1 // pred_check
      _
    $region47: #{tpu_custom_call.1} parent=1 // pred_check_branch
      %98 = sbr.rel (0) target = $region49
    $region48: #{tpu_custom_call.1} parent=1 // pred_region
      %99 = dma.done [#allocation9], 512
    $region49: #{tpu_custom_call.1} parent=1 // pred_fallthru
      _
    // Predicated region
    $region50: #{tpu_custom_call.1} parent=1 // pred_check
      _
    $region51: #{tpu_custom_call.1} parent=1 // pred_check_branch
      %101 = sbr.rel (0) target = $region53
    $region52: #{tpu_custom_call.1} parent=1 // pred_region
      %102 = dma.done [#allocation12], 256
    $region53: #{tpu_custom_call.1} parent=1 // pred_fallthru
      _
    %v103 = vld [vmem:[#allocation2] sm:$0xff]
    %v104 = vld [vmem:[#allocation8] sm:$0xff]
    %v105 = vld [vmem:[#allocation8 + $0x8] sm:$0xff]
    %v106 = vld [vmem:[#allocation5] sm:$0xff]
    %v107 = vld [vmem:[#allocation10] sm:$0xff]
    %v108 = vld [vmem:[#allocation10 + $0x8] sm:$0xff]
    %v109 = vld [vmem:[#allocation10 + $0x10] sm:$0xff]
    %v110 = vld [vmem:[#allocation10 + $0x18] sm:$0xff]
    %vm111 = vcmask 261120
    %v113 = vsel %vm111, %v106, 0
    %115 = vmatprep.subr.mxu0 0.0
    %116 = vmatpush1.msra.mxu0 0.0
    %117 = vmatprep.subr.mxu0 0.0
    %118 = vmatpush1.msra.mxu0 0.0
    %119 = vmatprep.subr.mxu0 0.0
    %120 = vmatpush1.msra.mxu0 0.0
    %121 = vmatprep.subr.mxu0 0.0
    %122 = vmatpush1.msra.mxu0 0.0
    %123 = vmatprep.subr.mxu0 0.0
    %124 = vmatpush1.msra.mxu0 0.0
    %125 = vmatprep.subr.mxu0 0.0
    %126 = vmatpush1.msra.mxu0 0.0
    %127 = vmatprep.subr.mxu0 0.0
    %128 = vmatpush1.msra.mxu0 0.0
    %129 = vmatprep.subr.mxu0 0.0
    %130 = vmatpush1.msra.mxu0 0.0
    %131 = vmatprep.subr.mxu0 0.0
    %132 = vmatpush1.msra.mxu0 0.0
    %133 = vmatprep.subr.mxu0 0.0
    %134 = vmatpush1.msra.mxu0 0.0
    %135 = vmatprep.subr.mxu0 0.0
    %136 = vmatpush1.msra.mxu0 0.0
    %137 = vmatprep.subr.mxu0 0.0
    %138 = vmatpush1.msra.mxu0 0.0
    %139 = vmatprep.subr.mxu0 0.0
    %140 = vmatpush1.msra.mxu0 %v110
    %141 = vmatprep.subr.mxu0 0.0
    %142 = vmatpush1.msra.mxu0 %v109
    %143 = vmatprep.subr.mxu0 0.0
    %144 = vmatpush1.msra.mxu0 %v108
    %145 = vmatprep.subr.mxu0 0.0
    %146 = vmatpush1.msra.mxu0 %v107
    %147 = vmatprep.subr.mxu0 0.0
    %148 = vmatpush2.msra.mxu0 0.0
    %149 = vmatprep.subr.mxu0 0.0
    %150 = vmatpush2.msra.mxu0 0.0
    %151 = vmatprep.subr.mxu0 0.0
    %152 = vmatpush2.msra.mxu0 0.0
    %153 = vmatprep.subr.mxu0 0.0
    %154 = vmatpush2.msra.mxu0 0.0
    %155 = vmatprep.subr.mxu0 0.0
    %156 = vmatpush2.msra.mxu0 0.0
    %157 = vmatprep.subr.mxu0 0.0
    %158 = vmatpush2.msra.mxu0 0.0
    %159 = vmatprep.subr.mxu0 0.0
    %160 = vmatpush2.msra.mxu0 0.0
    %161 = vmatprep.subr.mxu0 0.0
    %162 = vmatpush2.msra.mxu0 0.0
    %163 = vmatprep.subr.mxu0 0.0
    %164 = vmatpush2.msra.mxu0 0.0
    %165 = vmatprep.subr.mxu0 0.0
    %166 = vmatpush2.msra.mxu0 0.0
    %167 = vmatprep.subr.mxu0 0.0
    %168 = vmatpush2.msra.mxu0 0.0
    %169 = vmatprep.subr.mxu0 0.0
    %170 = vmatpush2.msra.mxu0 0.0
    %171 = vmatprep.subr.mxu0 0.0
    %172 = vmatpush2.msra.mxu0 0.0
    %173 = vmatprep.subr.mxu0 0.0
    %174 = vmatpush2.msra.mxu0 0.0
    %175 = vmatprep.subr.mxu0 0.0
    %176 = vmatpush2.msra.mxu0 0.0
    %177 = vmatprep.subr.mxu0 0.0
    %178 = vmatpush2.msra.mxu0 0.0
    %179 = vmatprep.mubr.f32.mxu0 0.0
    %180 = vmatmul.mubr.f32.gmra.mxu0 %v113
    %v181 = vpop.f32.mrf.mxu0
    %v182 = vadd.f32 0.0, %v181
    %v183 = vpop.f32.mrf.mxu0
    %184 = vdwg.mxu0
    %vm185 = vcmask 130048
    %v187 = vsel %vm185, %v103, 0
    %189 = vmatprep.subr.mxu0 0.0
    %190 = vmatpush1.msra.mxu0 0.0
    %191 = vmatprep.subr.mxu0 0.0
    %192 = vmatpush1.msra.mxu0 0.0
    %193 = vmatprep.subr.mxu0 0.0
    %194 = vmatpush1.msra.mxu0 0.0
    %195 = vmatprep.subr.mxu0 0.0
    %196 = vmatpush1.msra.mxu0 0.0
    %197 = vmatprep.subr.mxu0 0.0
    %198 = vmatpush1.msra.mxu0 0.0
    %199 = vmatprep.subr.mxu0 0.0
    %200 = vmatpush1.msra.mxu0 0.0
    %201 = vmatprep.subr.mxu0 0.0
    %202 = vmatpush1.msra.mxu0 0.0
    %203 = vmatprep.subr.mxu0 0.0
    %204 = vmatpush1.msra.mxu0 0.0
    %205 = vmatprep.subr.mxu0 0.0
    %206 = vmatpush1.msra.mxu0 0.0
    %207 = vmatprep.subr.mxu0 0.0
    %208 = vmatpush1.msra.mxu0 0.0
    %209 = vmatprep.subr.mxu0 0.0
    %210 = vmatpush1.msra.mxu0 0.0
    %211 = vmatprep.subr.mxu0 0.0
    %212 = vmatpush1.msra.mxu0 0.0
    %213 = vmatprep.subr.mxu0 0.0
    %214 = vmatpush1.msra.mxu0 0.0
    %215 = vmatprep.subr.mxu0 0.0
    %216 = vmatpush1.msra.mxu0 0.0
    %217 = vmatprep.subr.mxu0 0.0
    %218 = vmatpush1.msra.mxu0 %v105
    %219 = vmatprep.subr.mxu0 0.0
    %220 = vmatpush1.msra.mxu0 %v104
    %221 = vmatprep.subr.mxu0 0.0
    %222 = vmatpush2.msra.mxu0 0.0
    %223 = vmatprep.subr.mxu0 0.0
    %224 = vmatpush2.msra.mxu0 0.0
    %225 = vmatprep.subr.mxu0 0.0
    %226 = vmatpush2.msra.mxu0 0.0
    %227 = vmatprep.subr.mxu0 0.0
    %228 = vmatpush2.msra.mxu0 0.0
    %229 = vmatprep.subr.mxu0 0.0
    %230 = vmatpush2.msra.mxu0 0.0
    %231 = vmatprep.subr.mxu0 0.0
    %232 = vmatpush2.msra.mxu0 0.0
    %233 = vmatprep.subr.mxu0 0.0
    %234 = vmatpush2.msra.mxu0 0.0
    %235 = vmatprep.subr.mxu0 0.0
    %236 = vmatpush2.msra.mxu0 0.0
    %237 = vmatprep.subr.mxu0 0.0
    %238 = vmatpush2.msra.mxu0 0.0
    %239 = vmatprep.subr.mxu0 0.0
    %240 = vmatpush2.msra.mxu0 0.0
    %241 = vmatprep.subr.mxu0 0.0
    %242 = vmatpush2.msra.mxu0 0.0
    %243 = vmatprep.subr.mxu0 0.0
    %244 = vmatpush2.msra.mxu0 0.0
    %245 = vmatprep.subr.mxu0 0.0
    %246 = vmatpush2.msra.mxu0 0.0
    %247 = vmatprep.subr.mxu0 0.0
    %248 = vmatpush2.msra.mxu0 0.0
    %249 = vmatprep.subr.mxu0 0.0
    %250 = vmatpush2.msra.mxu0 0.0
    %251 = vmatprep.subr.mxu0 0.0
    %252 = vmatpush2.msra.mxu0 0.0
    %253 = vmatprep.mubr.f32.mxu0 0.0
    %254 = vmatmul.mubr.f32.gmra.mxu0 %v187
    %v255 = vpop.f32.mrf.mxu0
    %v256 = vadd.f32 %v182, %v255
    %v257 = vpop.f32.mrf.mxu0
    %258 = vdwg.mxu0
    %v259 = vld [vmem:[#allocation7] sm:$0xff]
    %v260 = vld [vmem:[#allocation11] sm:$0xff]
    %v261 = vld [vmem:[#allocation11 + $0x8] sm:$0xff]
    %v263 = vsel %vm185, %v259, 0
    %265 = vmatprep.subr.mxu0 0.0
    %266 = vmatpush1.msra.mxu0 0.0
    %267 = vmatprep.subr.mxu0 0.0
    %268 = vmatpush1.msra.mxu0 0.0
    %269 = vmatprep.subr.mxu0 0.0
    %270 = vmatpush1.msra.mxu0 0.0
    %271 = vmatprep.subr.mxu0 0.0
    %272 = vmatpush1.msra.mxu0 0.0
    %273 = vmatprep.subr.mxu0 0.0
    %274 = vmatpush1.msra.mxu0 0.0
    %275 = vmatprep.subr.mxu0 0.0
    %276 = vmatpush1.msra.mxu0 0.0
    %277 = vmatprep.subr.mxu0 0.0
    %278 = vmatpush1.msra.mxu0 0.0
    %279 = vmatprep.subr.mxu0 0.0
    %280 = vmatpush1.msra.mxu0 0.0
    %281 = vmatprep.subr.mxu0 0.0
    %282 = vmatpush1.msra.mxu0 0.0
    %283 = vmatprep.subr.mxu0 0.0
    %284 = vmatpush1.msra.mxu0 0.0
    %285 = vmatprep.subr.mxu0 0.0
    %286 = vmatpush1.msra.mxu0 0.0
    %287 = vmatprep.subr.mxu0 0.0
    %288 = vmatpush1.msra.mxu0 0.0
    %289 = vmatprep.subr.mxu0 0.0
    %290 = vmatpush1.msra.mxu0 0.0
    %291 = vmatprep.subr.mxu0 0.0
    %292 = vmatpush1.msra.mxu0 0.0
    %293 = vmatprep.subr.mxu0 0.0
    %294 = vmatpush1.msra.mxu0 %v261
    %295 = vmatprep.subr.mxu0 0.0
    %296 = vmatpush1.msra.mxu0 %v260
    %297 = vmatprep.subr.mxu0 0.0
    %298 = vmatpush2.msra.mxu0 0.0
    %299 = vmatprep.subr.mxu0 0.0
    %300 = vmatpush2.msra.mxu0 0.0
    %301 = vmatprep.subr.mxu0 0.0
    %302 = vmatpush2.msra.mxu0 0.0
    %303 = vmatprep.subr.mxu0 0.0
    %304 = vmatpush2.msra.mxu0 0.0
    %305 = vmatprep.subr.mxu0 0.0
    %306 = vmatpush2.msra.mxu0 0.0
    %307 = vmatprep.subr.mxu0 0.0
    %308 = vmatpush2.msra.mxu0 0.0
    %309 = vmatprep.subr.mxu0 0.0
    %310 = vmatpush2.msra.mxu0 0.0
    %311 = vmatprep.subr.mxu0 0.0
    %312 = vmatpush2.msra.mxu0 0.0
    %313 = vmatprep.subr.mxu0 0.0
    %314 = vmatpush2.msra.mxu0 0.0
    %315 = vmatprep.subr.mxu0 0.0
    %316 = vmatpush2.msra.mxu0 0.0
    %317 = vmatprep.subr.mxu0 0.0
    %318 = vmatpush2.msra.mxu0 0.0
    %319 = vmatprep.subr.mxu0 0.0
    %320 = vmatpush2.msra.mxu0 0.0
    %321 = vmatprep.subr.mxu0 0.0
    %322 = vmatpush2.msra.mxu0 0.0
    %323 = vmatprep.subr.mxu0 0.0
    %324 = vmatpush2.msra.mxu0 0.0
    %325 = vmatprep.subr.mxu0 0.0
    %326 = vmatpush2.msra.mxu0 0.0
    %327 = vmatprep.subr.mxu0 0.0
    %328 = vmatpush2.msra.mxu0 0.0
    %329 = vmatprep.mubr.f32.mxu0 0.0
    %330 = vmatmul.mubr.f32.gmra.mxu0 %v263
    %v331 = vpop.f32.mrf.mxu0
    %v332 = vadd.f32 0.0, %v331
    %v333 = vpop.f32.mrf.mxu0
    %334 = vdwg.mxu0
    %v335 = vadd.f32 %v256, %v332
    %v336 = vld [vmem:[%s6] sm:$0x1]
    %v338 = vlaneseq
    %v339 = vshrl.u32 %v338, 7
    %v340 = vsub.s32 0, %v339
    %v341 = vrot.slane %v336, %v340
    %v343 = vadd.f32 %v335, %v341
    %344 = vmax.xlane.f32.xlu0 %v343
    %v345 = vpop.xlane.xlu0 %344
    %v346 = vsub.f32 %v343, %v345
    %v347 = vmul.f32 %v346, 1.442695
    %v348 = vpow.pop %v347
    %349 = vadd.xlane.f32.xlu0 %v348
    %v350 = vpop.xlane.xlu0 %349
    %v351 = vrcp.pop %v350
    %v352 = vmul.f32 %v348, %v351
    %353 = vst [vmem:[#allocation13] sm:$0xff] %v352
    // Predicated region
    $region54: #{tpu_custom_call.1} parent=1 // pred_check
      _
    $region55: #{tpu_custom_call.1} parent=1 // pred_check_branch
      %355 = sbr.rel (0) target = $region57
    $region56: #{tpu_custom_call.1} parent=1 // pred_region
      %s357 = ssub.s32 128, 128
      %358 = vsyncadd [#allocation4], %s357
      %s360 = sshll.u32 [#allocation13], 4
      %s361 = int_to_ptr.vmem [resolvable:$true] %s360
      %363 = dma.vmem_to_hbm [thread:$0]  %s361, 128, %s7, [#allocation4]
    $region57: #{tpu_custom_call.1} parent=1 // pred_fallthru
      _
    // Predicated region
    $region58: #{tpu_custom_call.1} parent=1 // pred_check
      _
    $region59: #{tpu_custom_call.1} parent=1 // pred_check_branch
      %365 = sbr.rel (0) target = $region61
    $region60: #{tpu_custom_call.1} parent=1 // pred_region
      %366 = dma.done [#allocation4], 128
    $region61: #{tpu_custom_call.1} parent=1 // pred_fallthru
      _
    %367 = vsyncpa [#allocation3], 1
    %368 = vsyncpa [#allocation6], 1
    %369 = vsyncpa [#allocation9], 1
    %370 = vsyncpa [#allocation12], 1
    %371 = vsyncpa [#allocation4], 1

</llo_original>
